<compile_context>
chip_gen: v5e
topology: v5e:2x2
jax: 0.10.0
libtpu: 0.0.40
codegen_flags: <defaults>
</compile_context>

<pallas_src>
import functools

import jax
import jax.numpy as jnp
from jax.experimental import pallas as pl
from jax.experimental.pallas import tpu as pltpu


def _round_up(n, m):
    return ((n + m - 1) // m) * m


def _bf16_native():
    """True on chips with bf16 VPU/EUP (v6e / v7x); False on v5-class and older."""
    try:
        kind = jax.devices()[0].device_kind.lower()
        return not any(tag in kind for tag in ("v2", "v3", "v4", "v5"))
    except Exception:  # defensive: default to the safe f32 path
        return False


def _clamper_jnp(x, lower, upper, method):
    """Plain-JAX fallback for tiny inputs (XLA fuses this into adjacent ops)."""
    if method == "hard":
        out = x
        if lower is not None:
            out = jnp.maximum(out, jnp.asarray(lower, x.dtype))
        if upper is not None:
            out = jnp.minimum(out, jnp.asarray(upper, x.dtype))
        return out
    elif method == "tanh":
        lo = jnp.asarray(lower, jnp.float32)
        hi = jnp.asarray(upper, jnp.float32)
        y = jnp.tanh(x.astype(jnp.float32)) * (hi - lo) * 0.5 + (hi + lo) * 0.5
        return y.astype(x.dtype)
    raise ValueError(f"unknown clamp method: {method}")


def _clamper_kernel(method, has_lower, has_upper, compute_dtype, x_ref, *rest):
    """One (tb, td) tile of the clamp.

    rest = (*bound_refs, o_ref).  Each bound ref is a (1, td) VMEM tile whose
    index_map is constant along the row axis, so it stays resident in VMEM and
    is DMA'd only when the feature tile changes.
    """
    *bound_refs, o_ref = rest
    x = x_ref[...]
    if compute_dtype is not None:
        x = x.astype(compute_dtype)
    if method == "hard":
        # max-then-min matches torch.clamp semantics (upper wins if lower > upper).
        u = x
        idx = 0
        if has_lower:
            u = jnp.maximum(u, bound_refs[idx][...])
            idx += 1
        if has_upper:
            u = jnp.minimum(u, bound_refs[idx][...])
    else:  # tanh: scale/shift precomputed in the wrapper (no per-step sub/add)
        scale_ref, shift_ref = bound_refs
        u = jnp.tanh(x) * scale_ref[...] + shift_ref[...]
    o_ref[...] = u.astype(o_ref.dtype)


def clamper_forward(x, lower=None, upper=None, method="hard",
                    max_block_rows=4096, min_kernel_elements=65536,
                    donate_input=False):
    """Pallas implementation of Clamper(lower, upper, method).forward(x).

    x            : any shape; clamped elementwise.
    lower, upper : None, scalar, or per-feature vector broadcastable to
                   x.shape[-1] (score_po uses (dim_u,) bounds).
    method       : "hard" (Clamper.Method.HARD) or "tanh" (Clamper.Method.TANH).
    """
    if lower is None and upper is None:
        return x  # Clamper(None, None) is the identity - no kernel, no copy.

    if method not in ("hard", "tanh"):
        raise ValueError(f"unknown clamp method: {method}")
    if method == "tanh" and (lower is None or upper is None):
        raise ValueError("TANH clamp needs both bounds")

    # Tiny inputs (the actual score_po control batches, e.g. (B, dim_u)=(8,16)):
    # the pallas_call launch costs more than the clamp itself; let XLA fuse it.
    if x.size < min_kernel_elements:
        return _clamper_jnp(x, lower, upper, method)

    orig_shape = x.shape
    D = orig_shape[-1]
    x2 = x.reshape(-1, D)
    R = x2.shape[0]
    xdt = jnp.dtype(x.dtype)

    # --- per-method bound vectors (and compute dtype) ------------------------
    if method == "hard":
        compute_dtype = None  # clamp natively in x.dtype: exact, matches torch
        bounds = []
        if lower is not None:
            bounds.append(jnp.broadcast_to(jnp.asarray(lower, xdt), (D,)))
        if upper is not None:
            bounds.append(jnp.broadcast_to(jnp.asarray(upper, xdt), (D,)))
        has_lower, has_upper = lower is not None, upper is not None
    else:  # tanh
        # bf16-capable chips (v6e/v7x) keep the whole tile packed in bf16;
        # v5-class chips (no bf16 VPU/EUP) upcast to f32.
        if xdt == jnp.dtype(jnp.float32):
            compute_dtype = jnp.float32
        else:
            compute_dtype = xdt if _bf16_native() else jnp.float32
        lo = jnp.broadcast_to(jnp.asarray(lower, compute_dtype), (D,))
        hi = jnp.broadcast_to(jnp.asarray(upper, compute_dtype), (D,))
        bounds = [(hi - lo) * 0.5, (hi + lo) * 0.5]  # precomputed scale, shift
        has_lower = has_upper = True

    # --- lane-dense repack for small feature dims -----------------------------
    # score_po uses dim_u ~ 16; a (tb, 16) block wastes 112/128 lanes.  When
    # 128 % D == 0, view x row-major as (R*D/128, 128) (metadata reshape, no
    # HBM copy) and tile the bound vectors to match: 8x fewer DMA bytes/vops.
    if D < 128 and 128 % D == 0 and (R * D) % 128 == 0:
        rep = 128 // D
        x2 = x2.reshape(R * D // 128, 128)
        bounds = [jnp.tile(b, rep) for b in bounds]
    R_eff, D_eff = x2.shape
    bounds = [b.reshape(1, D_eff) for b in bounds]

    # --- tile sizing -----------------------------------------------------------
    itemsize = xdt.itemsize
    payload_budget = 16 << 20  # live double-buffered payload; safe on v7x (64 MiB VMEM)
    if D_eff % 128 == 0 and D_eff * itemsize * 8 * 4 > payload_budget:
        # Very wide features: add a feature-axis grid so the 8-row floor cannot
        # blow past the scoped VMEM limit.
        td = max(128, ((payload_budget // (4 * 8 * itemsize)) // 128) * 128)
        td = min(td, D_eff)
    else:
        # Full-extent last block dim satisfies the (8,128) rule even when D_eff
        # is not a multiple of 128 (Pallas masks the ragged edge itself).
        # TODO(synk): an extremely wide D that is not a 128-multiple would still
        # use full-width blocks here.
        td = D_eff

    tb = (payload_budget // 4) // max(td * itemsize, 1)
    tb = min(tb, max_block_rows)
    if R_eff >= 16:
        # Keep >= 2 grid steps so v7x can shard the parallel axis across both TCs.
        tb = min(tb, _round_up(-(-R_eff // 2), 8))
    tb = min(tb, _round_up(R_eff, 8))
    tb = max(8, (tb // 8) * 8)

    grid = (pl.cdiv(R_eff, tb), pl.cdiv(D_eff, td))

    kernel = functools.partial(_clamper_kernel, method, has_lower, has_upper,
                               compute_dtype)
    x_spec = pl.BlockSpec((tb, td), lambda i, j: (i, j))
    bound_spec = pl.BlockSpec((1, td), lambda i, j: (0, j))  # resident along rows

    out = pl.pallas_call(
        kernel,
        out_shape=jax.ShapeDtypeStruct((R_eff, D_eff), x.dtype),
        grid=grid,
        in_specs=[x_spec] + [bound_spec] * len(bounds),
        out_specs=pl.BlockSpec((tb, td), lambda i, j: (i, j)),
        # Write the result in place when the caller can donate x.
        input_output_aliases=({0: 0} if donate_input else {}),
        compiler_params=pltpu.CompilerParams(
            dimension_semantics=("parallel", "parallel"),
            vmem_limit_bytes=32 * 1024 * 1024),
    )(x2, *bounds)

    return out.reshape(orig_shape)


if __name__ == "__main__":
    key = jax.random.PRNGKey(0)
    k1, k2, k3 = jax.random.split(key, 3)

    # --- the actual score_po use-case: tiny control batch -> fused jnp path ---
    B, dim_u = 8, 16
    x_small = 2.0 * jax.random.normal(k1, (B, dim_u), dtype=jnp.float32)
    lower = -0.5 - 0.05 * jnp.arange(dim_u, dtype=jnp.float32)
    upper = 0.5 + 0.05 * jnp.arange(dim_u, dtype=jnp.float32)

    u_small = jax.block_until_ready(
        clamper_forward(x_small, lower, upper, method="hard"))
    assert jnp.allclose(u_small, jnp.clip(x_small, lower[None], upper[None]), atol=1e-6)

    # Identity: Clamper(None, None) returns the input untouched.
    assert clamper_forward(x_small, None, None, method="hard") is x_small

    # --- kernel path, lane-dense repack (D=16 -> (R/8, 128) view) --------------
    R1 = 1024
    x1 = 2.0 * jax.random.normal(k2, (R1, dim_u), dtype=jnp.float32)

    u1 = jax.block_until_ready(
        clamper_forward(x1, lower, upper, method="hard", min_kernel_elements=0))
    assert u1.shape == x1.shape and u1.dtype == x1.dtype
    assert jnp.allclose(u1, jnp.clip(x1, lower[None], upper[None]), atol=1e-6)

    u1_t = jax.block_until_ready(
        clamper_forward(x1, lower, upper, method="tanh", min_kernel_elements=0))
    ref1_t = jnp.tanh(x1) * (upper - lower) * 0.5 + (upper + lower) * 0.5
    assert jnp.allclose(u1_t, ref1_t, atol=1e-5, rtol=1e-5)

    # One-sided hard clamp (upper=None): only the lower bound is shipped.
    u1_lo = jax.block_until_ready(
        clamper_forward(x1, lower, None, method="hard", min_kernel_elements=0))
    assert jnp.allclose(u1_lo, jnp.maximum(x1, lower[None]), atol=1e-6)

    # bf16 input: hard clamp runs natively in bf16 against bf16-cast bounds.
    x1_bf = x1.astype(jnp.bfloat16)
    u1_bf = jax.block_until_ready(
        clamper_forward(x1_bf, lower, upper, method="hard", min_kernel_elements=0))
    ref_bf = jnp.clip(x1_bf, lower.astype(jnp.bfloat16)[None],
                      upper.astype(jnp.bfloat16)[None])
    assert u1_bf.dtype == jnp.bfloat16
    assert jnp.allclose(u1_bf.astype(jnp.float32), ref_bf.astype(jnp.float32))

    # --- kernel path, ragged feature dim (D=200, not a multiple of 128) --------
    R2, D2 = 512, 200
    x_r = jax.random.normal(k3, (R2, D2), dtype=jnp.float32)
    lo2 = -0.3 * jnp.ones((D2,), jnp.float32)
    hi2 = 0.7 * jnp.ones((D2,), jnp.float32)
    u_r = jax.block_until_ready(
        clamper_forward(x_r, lo2, hi2, method="hard",
                        max_block_rows=128, min_kernel_elements=0))
    assert jnp.allclose(u_r, jnp.clip(x_r, lo2[None], hi2[None]), atol=1e-6)

    print("KERNEL_OK")
</pallas_src>

<mosaic_0001>
module attributes {stable_mosaic.version = 11 : i64} {
  func.func @_clamper_kernel(%arg0: i32, %arg1: i32, %arg2: memref<64x128xf32, #tpu.memory_space<vmem>>, %arg3: memref<1x128xf32, #tpu.memory_space<vmem>>, %arg4: memref<1x128xf32, #tpu.memory_space<vmem>>, %arg5: memref<64x128xf32, #tpu.memory_space<vmem>>) attributes {dimension_semantics = [#tpu.dimension_semantics<parallel>, #tpu.dimension_semantics<parallel>], iteration_bounds = array<i64: 2, 1>, scalar_prefetch = 0 : i64, scratch_operands = 0 : i64, tpu.core_type = #tpu.core_type<tc>, window_params = [{transform_indices = @transform_0, window_bounds = array<i64: 64, 128>}, {transform_indices = @transform_1, window_bounds = array<i64: 1, 128>}, {transform_indices = @transform_2, window_bounds = array<i64: 1, 128>}, {transform_indices = @transform_3, window_bounds = array<i64: 64, 128>}]} {
    %c0 = arith.constant 0 : index
    %c0_0 = arith.constant 0 : index
    %0 = vector.load %arg2[%c0, %c0_0] : memref<64x128xf32, #tpu.memory_space<vmem>>, vector<64x128xf32>
    %c0_1 = arith.constant 0 : index
    %c0_2 = arith.constant 0 : index
    %1 = vector.load %arg3[%c0_1, %c0_2] : memref<1x128xf32, #tpu.memory_space<vmem>>, vector<1x128xf32>
    %2 = vector.broadcast %1 : vector<1x128xf32> to vector<64x128xf32>
    %3 = arith.maximumf %0, %2 : vector<64x128xf32>
    %c0_3 = arith.constant 0 : index
    %c0_4 = arith.constant 0 : index
    %4 = vector.load %arg4[%c0_3, %c0_4] : memref<1x128xf32, #tpu.memory_space<vmem>>, vector<1x128xf32>
    %5 = vector.broadcast %4 : vector<1x128xf32> to vector<64x128xf32>
    %6 = arith.minimumf %3, %5 : vector<64x128xf32>
    %c0_5 = arith.constant 0 : index
    %c0_6 = arith.constant 0 : index
    %7 = vector.load %arg5[%c0_5, %c0_6] : memref<64x128xf32, #tpu.memory_space<vmem>>, vector<64x128xf32>
    tpu.vector_store %arg5[%c0_5, %c0_6], %6 {strides = array<i32>} : memref<64x128xf32, #tpu.memory_space<vmem>>, vector<64x128xf32>,
    return
  }
  func.func @transform_0(%arg0: i32, %arg1: i32) -> (i32, i32) {
    %c0_i32 = arith.constant 0 : i32
    return %arg0, %arg1 : i32, i32
  }
  func.func @transform_1(%arg0: i32, %arg1: i32) -> (i32, i32) {
    %c0_i32 = arith.constant 0 : i32
    %c0_i32_0 = arith.constant 0 : i32
    return %c0_i32, %arg1 : i32, i32
  }
  func.func @transform_2(%arg0: i32, %arg1: i32) -> (i32, i32) {
    %c0_i32 = arith.constant 0 : i32
    %c0_i32_0 = arith.constant 0 : i32
    return %c0_i32, %arg1 : i32, i32
  }
  func.func @transform_3(%arg0: i32, %arg1: i32) -> (i32, i32) {
    %c0_i32 = arith.constant 0 : i32
    return %arg0, %arg1 : i32, i32
  }
}

</mosaic_0001>

<llo_original>
// kernel: tpu_custom_call.1
$region0: #{tpu_custom_call.1}
  #allocation0 [shape = 'u32[]', space=smem, size = 0x4, offset = 0x4, fixed_abs, tag = 'smem constant byte address 0x4 - core index']
  #allocation1 [shape = 'u32[72,128]{1,0:T(1,128)}', space=vmem, size = 0x9000, scoped, tag = 'internal scratch']
  %s0 = inlined_call_operand.hbm [shape: f32[128,128], index: 0, kind: input, shape index: {}]
  %s1 = inlined_call_operand.hbm [shape: f32[1,128], index: 1, kind: input, shape index: {}]
  %s2 = inlined_call_operand.vmem [shape: f32[1,128], index: 2, kind: input, shape index: {}]
  %s3 = inlined_call_operand.hbm [shape: f32[128,128], index: 3, kind: output, shape index: {}]
  %s4 = sld [smem:[#allocation0]]
  $region53: #{tpu_custom_call.1} parent=0
    _
  %s6 = ssub.s32 1, %s4
  %s7 = scalar_select 0, %s6, %s4
  $region1: #{tpu_custom_call.1} parent=0
    #allocation2 [shape = 'u8[65536]{0}', space=vmem, size = 0x10000, scoped, tag = 'input window, operand 0']
    #allocation3 [shape = 's32[2]{0}', space=sflag, size = 0x8, scoped, tag = 'scoped memory for tpu_custom_call.1']
    #allocation4 [shape = 's32[2]{0}', space=sflag, size = 0x8, scoped, tag = 'scoped memory for tpu_custom_call.1']
    #allocation5 [shape = 'u8[512]{0}', space=vmem, size = 0x400, scoped, tag = 'input window, operand 1, single buffered']
    #allocation6 [shape = 's32[1]{0}', space=sflag, size = 0x4, scoped, tag = 'scoped memory for tpu_custom_call.1']
    #allocation7 [shape = 'u8[65536]{0}', space=vmem, size = 0x10000, scoped, tag = 'output window, operand 0']
    %8 = vsyncpa [#allocation3], 0
    %s9 = scalar_lea.sflag [#allocation3], 1
    %10 = vsyncpa %s9, 0
    %11 = vsyncpa [#allocation6], 0
    %12 = vsyncpa [#allocation4], 0
    %s13 = scalar_lea.sflag [#allocation4], 1
    %14 = vsyncpa %s13, 0
    loop: start=0, step=1, limit=4
    $region2: #{tpu_custom_call.1} parent=1 // loop_pre_header
      _
    $region3: #{tpu_custom_call.1} parent=1 // loop_header
      %s16 = sphi 0, %s20
      %p17 = scmp.ge.s32.totalorder %s16, 4
      %s23 = sphi 0, %s35
      %s24 = sphi 0, %s31
      %s25 = sphi 0, %s23
      %s26 = sphi 0, %s24
      %s27 = sphi 0, %s25
      %s28 = sphi 0, %s26
      %s40 = sphi 0, %s42
      %s43 = sphi 0, %s40
      %s44 = sphi 0, %s43
      %s60 = sphi 0, %s44
      %s66 = sphi 0, %s68
      %s69 = sphi 0, %s66
      %s70 = sphi 0, %s69
      %s86 = sphi 0, %s70
      %s92 = sphi 0, %s94
      %s95 = sphi 0, %s92
      %s96 = sphi 0, %s95
      %s112 = sphi 0, %s96
      %s120 = sphi 0, %s122
      %s123 = sphi 0, %s120
      %s124 = sphi 0, %s123
      %s140 = sphi 0, %s124
    $region4: #{tpu_custom_call.1} parent=1 // loop_header_branch
      %19 = sbr.rel (%p17) target = $region8
    $region5: #{tpu_custom_call.1} parent=1 // loop_body
      %s21 = ssub.s32 %s16, 1
      %s22 = ssub.s32 %s16, 2
      %s29 = sadd.s32 1, %s24
      %p30 = scmp.ge.s32.totalorder %s29, 1
      %s31 = scalar_select %p30, 0, %s29
      %s32 = sadd.s32 1, %s23
      %s33 = scalar_select %p30, %s32, %s23
      %p34 = scmp.ge.s32.totalorder %s33, 2
      %s35 = scalar_select %p34, 0, %s33
      %s36 = ssub.s32 %s23, %s35
      %s37 = ssub.s32 %s24, %s31
      %s38 = sor.u32 %s36, %s37
      %p39 = scmp.eq.s32.totalorder %s38, 0
      %s41 = sadd.s32 %s40, 1
      %s42 = scalar_select %p39, %s40, %s41
      %p45 = pneg %p39
      %p46 = scmp.eq.s32.totalorder %s16, 1
      %p47 = por %p45, %p46
      %p48 = scmp.ne.s32.totalorder %s40, %s43
      %p49 = scmp.eq.s32.totalorder %s16, 0
      %p50 = por %p48, %p49
      %p51 = scmp.ne.s32.totalorder %s40, %s43
      %p52 = scmp.eq.s32.totalorder %s21, 1
      %p53 = por %p51, %p52
      %p54 = scmp.ne.s32.totalorder %s43, %s44
      %p55 = scmp.eq.s32.totalorder %s21, 0
      %p56 = por %p54, %p55
      %p57 = scmp.ne.s32.totalorder %s43, %s44
      %p58 = scmp.eq.s32.totalorder %s22, 1
      %p59 = por %p57, %p58
      %p61 = scmp.ne.s32.totalorder %s44, %s60
      %p62 = scmp.eq.s32.totalorder %s22, 0
      %p63 = por %p61, %p62
      %s64 = ssub.s32 %s24, %s31
      %p65 = scmp.eq.s32.totalorder %s64, 0
      %s67 = sadd.s32 %s66, 1
      %s68 = scalar_select %p65, %s66, %s67
      %p71 = pneg %p65
      %p72 = scmp.eq.s32.totalorder %s16, 1
      %p73 = por %p71, %p72
      %p74 = scmp.ne.s32.totalorder %s66, %s69
      %p75 = scmp.eq.s32.totalorder %s16, 0
      %p76 = por %p74, %p75
      %p77 = scmp.ne.s32.totalorder %s66, %s69
      %p78 = scmp.eq.s32.totalorder %s21, 1
      %p79 = por %p77, %p78
      %p80 = scmp.ne.s32.totalorder %s69, %s70
      %p81 = scmp.eq.s32.totalorder %s21, 0
      %p82 = por %p80, %p81
      %p83 = scmp.ne.s32.totalorder %s69, %s70
      %p84 = scmp.eq.s32.totalorder %s22, 1
      %p85 = por %p83, %p84
      %p87 = scmp.ne.s32.totalorder %s70, %s86
      %p88 = scmp.eq.s32.totalorder %s22, 0
      %p89 = por %p87, %p88
      %s90 = ssub.s32 %s24, %s31
      %p91 = scmp.eq.s32.totalorder %s90, 0
      %s93 = sadd.s32 %s92, 1
      %s94 = scalar_select %p91, %s92, %s93
      %p97 = pneg %p91
      %p98 = scmp.eq.s32.totalorder %s16, 1
      %p99 = por %p97, %p98
      %p100 = scmp.ne.s32.totalorder %s92, %s95
      %p101 = scmp.eq.s32.totalorder %s16, 0
      %p102 = por %p100, %p101
      %p103 = scmp.ne.s32.totalorder %s92, %s95
      %p104 = scmp.eq.s32.totalorder %s21, 1
      %p105 = por %p103, %p104
      %p106 = scmp.ne.s32.totalorder %s95, %s96
      %p107 = scmp.eq.s32.totalorder %s21, 0
      %p108 = por %p106, %p107
      %p109 = scmp.ne.s32.totalorder %s95, %s96
      %p110 = scmp.eq.s32.totalorder %s22, 1
      %p111 = por %p109, %p110
      %p113 = scmp.ne.s32.totalorder %s96, %s112
      %p114 = scmp.eq.s32.totalorder %s22, 0
      %p115 = por %p113, %p114
      %s116 = ssub.s32 %s23, %s35
      %s117 = ssub.s32 %s24, %s31
      %s118 = sor.u32 %s116, %s117
      %p119 = scmp.eq.s32.totalorder %s118, 0
      %s121 = sadd.s32 %s120, 1
      %s122 = scalar_select %p119, %s120, %s121
      %p125 = pneg %p119
      %p126 = scmp.eq.s32.totalorder %s16, 1
      %p127 = por %p125, %p126
      %p128 = scmp.ne.s32.totalorder %s120, %s123
      %p129 = scmp.eq.s32.totalorder %s16, 0
      %p130 = por %p128, %p129
      %p131 = scmp.ne.s32.totalorder %s120, %s123
      %p132 = scmp.eq.s32.totalorder %s21, 1
      %p133 = por %p131, %p132
      %p134 = scmp.ne.s32.totalorder %s123, %s124
      %p135 = scmp.eq.s32.totalorder %s21, 0
      %p136 = por %p134, %p135
      %p137 = scmp.ne.s32.totalorder %s123, %s124
      %p138 = scmp.eq.s32.totalorder %s22, 1
      %p139 = por %p137, %p138
      %p141 = scmp.ne.s32.totalorder %s124, %s140
      %p142 = scmp.eq.s32.totalorder %s22, 0
      %p143 = por %p141, %p142
      %p144 = scmp.le.s32.totalorder 1, %s16
      %p145 = scmp.lt.s32.totalorder %s16, 3
      %p146 = pnand %p144, %p145
      %p147 = pneg %p146
      // Predicated region
      $region9: #{tpu_custom_call.1} parent=5 // pred_check
        _
      $region10: #{tpu_custom_call.1} parent=5 // pred_check_branch
        %149 = sbr.rel (%p146) target = $region12
      $region11: #{tpu_custom_call.1} parent=5 // pred_region
        %s150 = ssub.s32 %s16, 1
        // Predicated region
        $region13: #{tpu_custom_call.1} parent=11 // pred_check
          %p151 = pneg %p82
        $region14: #{tpu_custom_call.1} parent=11 // pred_check_branch
          %153 = sbr.rel (%p151) target = $region16
        $region15: #{tpu_custom_call.1} parent=11 // pred_region
          %155 = vsyncadd [#allocation6], 0
          %s156 = scalar_lea.hbm %s1, %s26
          %s158 = sshll.u32 %s156, 4
          %s159 = int_to_ptr.hbm [resolvable:$true] %s158
          %s160 = sshll.u32 [#allocation5], 4
          %s161 = int_to_ptr.vmem [resolvable:$true] %s160
          %163 = dma.hbm_to_vmem [thread:$0]  %s159, 16, %s161, [#allocation6]
        $region16: #{tpu_custom_call.1} parent=11 // pred_fallthru
          _
        // Predicated region
        $region17: #{tpu_custom_call.1} parent=11 // pred_check
          %p164 = pneg %p108
        $region18: #{tpu_custom_call.1} parent=11 // pred_check_branch
          %166 = sbr.rel (%p164) target = $region20
        $region19: #{tpu_custom_call.1} parent=11 // pred_region
          %p167 = scmp.lt.s32.totalorder %s26, 0
          %s168 = scalar_select %p167, %s26, 0
          %s169 = scalar_lea.vmem %s2, %s168
        $region20: #{tpu_custom_call.1} parent=11 // pred_fallthru
          _
      $region12: #{tpu_custom_call.1} parent=5 // pred_fallthru
        _
      %p170 = scmp.lt.s32.totalorder %s16, 2
      // Predicated region
      $region21: #{tpu_custom_call.1} parent=5 // pred_check
        %p171 = pneg %p170
      $region22: #{tpu_custom_call.1} parent=5 // pred_check_branch
        %173 = sbr.rel (%p171) target = $region24
      $region23: #{tpu_custom_call.1} parent=5 // pred_region
        // Predicated region
        $region25: #{tpu_custom_call.1} parent=23 // pred_check
          %p174 = pneg %p50
        $region26: #{tpu_custom_call.1} parent=23 // pred_check_branch
          %176 = sbr.rel (%p174) target = $region28
        $region27: #{tpu_custom_call.1} parent=23 // pred_region
          %s177 = sand.u32 %s40, 1
          %s178 = scalar_lea.sflag [#allocation3], %s177
          %s179 = sand.u32 %s40, 1
          %s180 = smul.addr %s179, 64
          %s181 = scalar_lea.vmem [#allocation2], %s180
          %s182 = smul.u32 8, %s23
          %184 = vsyncadd %s178, 0
          %s185 = sadd.s32 %s24, %s182
          %s186 = smul.addr %s185, 8
          %s187 = scalar_lea.hbm %s0, %s186
          %s188 = sshll.u32 %s187, 4
          %s189 = int_to_ptr.hbm [resolvable:$true] %s188
          %s190 = sshll.u32 %s181, 4
          %s191 = int_to_ptr.vmem [resolvable:$true] %s190
          %196 = dma.hbm_to_vmem [thread:$0]  %s189, 1024, %s191, %s178, 128, 128, 8
        $region28: #{tpu_custom_call.1} parent=23 // pred_fallthru
          _
      $region24: #{tpu_custom_call.1} parent=5 // pred_fallthru
        _
      %p197 = scmp.le.s32.totalorder 1, %s16
      %p198 = scmp.lt.s32.totalorder %s16, 3
      %p199 = pnand %p197, %p198
      %p200 = pneg %p199
      // Predicated region
      $region29: #{tpu_custom_call.1} parent=5 // pred_check
        _
      $region30: #{tpu_custom_call.1} parent=5 // pred_check_branch
        %202 = sbr.rel (%p199) target = $region32
      $region31: #{tpu_custom_call.1} parent=5 // pred_region
        %s203 = ssub.s32 %s16, 1
        %s204 = sand.u32 %s43, 1
        %s205 = scalar_lea.sflag [#allocation3], %s204
        %s206 = sand.u32 %s43, 1
        %s207 = smul.addr %s206, 64
        %s208 = scalar_lea.vmem [#allocation2], %s207
        // Predicated region
        $region33: #{tpu_custom_call.1} parent=31 // pred_check
          %p209 = pneg %p56
        $region34: #{tpu_custom_call.1} parent=31 // pred_check_branch
          %211 = sbr.rel (%p209) target = $region36
        $region35: #{tpu_custom_call.1} parent=31 // pred_region
          %213 = dma.done %s205, 1024
        $region36: #{tpu_custom_call.1} parent=31 // pred_fallthru
          _
        // Predicated region
        $region37: #{tpu_custom_call.1} parent=31 // pred_check
          %p214 = pneg %p82
        $region38: #{tpu_custom_call.1} parent=31 // pred_check_branch
          %216 = sbr.rel (%p214) target = $region40
        $region39: #{tpu_custom_call.1} parent=31 // pred_region
          %218 = dma.done [#allocation6], 16
        $region40: #{tpu_custom_call.1} parent=31 // pred_fallthru
          _
        %s219 = sand.u32 %s43, 1
        %s220 = scalar_lea.sflag [#allocation3], %s219
        %s221 = sand.u32 %s43, 1
        %s222 = smul.addr %s221, 64
        %s223 = scalar_lea.vmem [#allocation2], %s222
        %p224 = pneg %p56
        %p225 = pneg %p53
        %p226 = pneg %p82
        %p227 = pneg %p79
        %p228 = scmp.lt.s32.totalorder %s26, 0
        %s229 = scalar_select %p228, %s26, 0
        %s230 = scalar_lea.vmem %s2, %s229
        %p231 = pneg %p108
        %p232 = pneg %p105
        %p233 = pneg %p136
        %p234 = pneg %p133
        %s235 = sand.u32 %s123, 1
        %s236 = scalar_lea.sflag [#allocation4], %s235
        %s237 = sand.u32 %s123, 1
        %s238 = smul.addr %s237, 64
        %s239 = scalar_lea.vmem [#allocation7], %s238
        %s240 = smul.u32 8, %s25
        %p241 = scmp.lt.s32.totalorder %s26, 0
        %s242 = scalar_select %p241, %s26, 0
        %s243 = scalar_lea.vmem %s2, %s242
        %s244 = smul.u32 8, %s25
        %v245 = vld [vmem:[%s208] sm:$0xff]
        %v246 = vld [vmem:[%s208 + $0x8] sm:$0xff]
        %v247 = vld [vmem:[%s208 + $0x10] sm:$0xff]
        %v248 = vld [vmem:[%s208 + $0x18] sm:$0xff]
        %v249 = vld [vmem:[%s208 + $0x20] sm:$0xff]
        %v250 = vld [vmem:[%s208 + $0x28] sm:$0xff]
        %v251 = vld [vmem:[%s208 + $0x30] sm:$0xff]
        %v252 = vld [vmem:[%s208 + $0x38] sm:$0xff]
        %v253 = vld [vmem:[#allocation5] sm:$0x1]
        %v255 = vperm.slane %v253, 0
        %v257 = vmax.f32 %v245, %v255
        %v258 = vmax.f32 %v246, %v255
        %v259 = vmax.f32 %v247, %v255
        %v260 = vmax.f32 %v248, %v255
        %v261 = vmax.f32 %v249, %v255
        %v262 = vmax.f32 %v250, %v255
        %v263 = vmax.f32 %v251, %v255
        %v264 = vmax.f32 %v252, %v255
        %v265 = vld [vmem:[%s243] sm:$0x1]
        %v267 = vperm.slane %v265, 0
        %v269 = vmin.f32 %v257, %v267
        %v270 = vmin.f32 %v258, %v267
        %v271 = vmin.f32 %v259, %v267
        %v272 = vmin.f32 %v260, %v267
        %v273 = vmin.f32 %v261, %v267
        %v274 = vmin.f32 %v262, %v267
        %v275 = vmin.f32 %v263, %v267
        %v276 = vmin.f32 %v264, %v267
        %277 = vst [vmem:[%s239] sm:$0xff] %v269
        %278 = vst [vmem:[%s239 + $0x8] sm:$0xff] %v270
        %279 = vst [vmem:[%s239 + $0x10] sm:$0xff] %v271
        %280 = vst [vmem:[%s239 + $0x18] sm:$0xff] %v272
        %281 = vst [vmem:[%s239 + $0x20] sm:$0xff] %v273
        %282 = vst [vmem:[%s239 + $0x28] sm:$0xff] %v274
        %283 = vst [vmem:[%s239 + $0x30] sm:$0xff] %v275
        %284 = vst [vmem:[%s239 + $0x38] sm:$0xff] %v276
        %s285 = sand.u32 %s123, 1
        %s286 = scalar_lea.sflag [#allocation4], %s285
        %s287 = sand.u32 %s123, 1
        %s288 = smul.addr %s287, 64
        %s289 = scalar_lea.vmem [#allocation7], %s288
        // Predicated region
        $region41: #{tpu_custom_call.1} parent=31 // pred_check
          %p290 = pneg %p133
        $region42: #{tpu_custom_call.1} parent=31 // pred_check_branch
          %292 = sbr.rel (%p290) target = $region44
        $region43: #{tpu_custom_call.1} parent=31 // pred_region
          %s293 = smul.u32 8, %s25
          %295 = vsyncadd %s286, 0
          %s296 = sadd.s32 %s26, %s293
          %s297 = smul.addr %s296, 8
          %s298 = scalar_lea.hbm %s3, %s297
          %s299 = sshll.u32 %s289, 4
          %s300 = int_to_ptr.vmem [resolvable:$true] %s299
          %s301 = sshll.u32 %s298, 4
          %s302 = int_to_ptr.hbm [resolvable:$true] %s301
          %307 = dma.vmem_to_hbm [thread:$0]  %s300, 1024, %s302, %s286, 128, 128, 8
        $region44: #{tpu_custom_call.1} parent=31 // pred_fallthru
          _
      $region32: #{tpu_custom_call.1} parent=5 // pred_fallthru
        _
      %p308 = scmp.le.s32.totalorder 2, %s16
      // Predicated region
      $region45: #{tpu_custom_call.1} parent=5 // pred_check
        %p309 = pneg %p308
      $region46: #{tpu_custom_call.1} parent=5 // pred_check_branch
        %311 = sbr.rel (%p309) target = $region48
      $region47: #{tpu_custom_call.1} parent=5 // pred_region
        %s312 = ssub.s32 %s16, 2
        // Predicated region
        $region49: #{tpu_custom_call.1} parent=47 // pred_check
          %p313 = pneg %p139
        $region50: #{tpu_custom_call.1} parent=47 // pred_check_branch
          %315 = sbr.rel (%p313) target = $region52
        $region51: #{tpu_custom_call.1} parent=47 // pred_region
          %s316 = sand.u32 %s124, 1
          %s317 = scalar_lea.sflag [#allocation4], %s316
          %s318 = sand.u32 %s124, 1
          %s319 = smul.addr %s318, 64
          %s320 = scalar_lea.vmem [#allocation7], %s319
          %322 = dma.done %s317, 1024
        $region52: #{tpu_custom_call.1} parent=47 // pred_fallthru
          _
      $region48: #{tpu_custom_call.1} parent=5 // pred_fallthru
        _
    $region6: #{tpu_custom_call.1} parent=1 // loop_footer
      %s20 = sadd.s32 1, %s16
    $region7: #{tpu_custom_call.1} parent=1 // loop_footer_branch
      %15 = sbr.rel target = $region3
    $region8: #{tpu_custom_call.1} parent=1 // loop_exit
      _
    %323 = vsyncpa [#allocation3], 1
    %s324 = scalar_lea.sflag [#allocation3], 1
    %325 = vsyncpa %s324, 1
    %326 = vsyncpa [#allocation6], 1
    %327 = vsyncpa [#allocation4], 1
    %s328 = scalar_lea.sflag [#allocation4], 1
    %329 = vsyncpa %s328, 1

</llo_original>
